<compile_context>
chip_gen: v7x
topology: tpu7x:2x2x1
jax: 0.10.0
libtpu: 0.0.40
codegen_flags: <defaults>
</compile_context>

<pallas_src>
import functools

import jax
import jax.numpy as jnp
from jax.experimental import pallas as pl
from jax.experimental.pallas import tpu as pltpu


def _round_up(x, m):
    return ((x + m - 1) // m) * m


def _pick_tile(padded, cap, align):
    """Largest t <= cap with t % align == 0 and padded % t == 0.

    `padded` is always a multiple of `align`, so `align` is a valid fallback.
    """
    t = (min(cap, padded) // align) * align
    while t > align and padded % t:
        t -= align
    return t


def _plan_tiles(Mp, Cp, Dp, batch):
    """Tile heuristic: GEMV-style for small batch, GEMM tiles otherwise."""
    gemv = batch <= 64
    tm_cap = Mp if gemv else 256          # small B: whole batch in one M block
    tn_cap = 512
    tk_cap = 4096 if gemv else 2048       # fatter weight tiles when MXU rows idle

    tm = _pick_tile(Mp, tm_cap, 8)
    tn = _pick_tile(Cp, tn_cap, 128)
    tk = _pick_tile(Dp, tk_cap, 128)

    # v7x megacore: make sure at least one "parallel" axis has >= 2 blocks so
    # the second TensorCore isn't idle (harmless on single-TC v5e/v6e).
    if Mp // tm == 1 and Cp // tn == 1:
        if Cp >= 256:
            half = Cp // 2
            tn = half if (half % 128 == 0 and Cp % half == 0) else 128
        elif Mp >= 32 and (Mp // 2) % 8 == 0:
            tm = Mp // 2
    return tm, tn, tk


def _linear_kernel(x_ref, w_ref, b_ref, o_ref):
    # x_ref: (tm, tk) bf16      w_ref: (tk, tn) bf16 (pre-transposed (D, C))
    # b_ref: (1, tn)  f32       o_ref: (tm, tn) f32, resident across the K axis
    k = pl.program_id(2)

    @pl.when(k == 0)
    def _():
        # Fold the bias into the accumulator init (no epilogue add needed).
        o_ref[...] = jnp.broadcast_to(b_ref[...], o_ref.shape)

    o_ref[...] += jnp.dot(x_ref[...], w_ref[...],
                          preferred_element_type=jnp.float32)


def prepare_linear_params(weight, bias):
    """One-time weight/bias preprocessing (cache the result across calls).

    weight: (C, D) float32 (PyTorch nn.Linear layout), bias: (C,) float32.
    Returns (w_p, b_p): (Dp, Cp) bf16 pre-transposed weight, (1, Cp) f32 bias.
    """
    C, D = weight.shape
    assert bias.shape == (C,)
    Dp = _round_up(D, 128)
    Cp = _round_up(C, 128)
    w_p = jnp.pad(weight.T, ((0, Dp - D), (0, Cp - C))).astype(jnp.bfloat16)
    b_p = jnp.pad(bias, (0, Cp - C)).astype(jnp.float32).reshape(1, Cp)
    return w_p, b_p


@functools.partial(jax.jit, static_argnames=("num_classes",))
def mlp_classifier_forward_prepared(x, w_p, b_p, *, num_classes):
    """y = x @ W.T + b using the cached (padded/bf16/transposed) parameters."""
    B, D = x.shape
    Dp, Cp = w_p.shape
    assert D <= Dp and num_classes <= Cp and b_p.shape == (1, Cp)

    Mp = _round_up(B, 16)                     # bf16 sublane packing: 16 rows/vreg
    x_p = jnp.pad(x, ((0, Mp - B), (0, Dp - D))).astype(jnp.bfloat16)

    tm, tn, tk = _plan_tiles(Mp, Cp, Dp, B)
    grid = (Mp // tm, Cp // tn, Dp // tk)

    # Double-buffered inputs + resident f32 output block.
    buffered = 2 * (tm * tk * 2 + tk * tn * 2 + tn * 4 + tm * tn * 4)
    vmem_limit = int(min(48 * 1024 * 1024, max(32 * 1024 * 1024, 2 * buffered)))

    cost = pl.CostEstimate(
        flops=2 * Mp * Dp * Cp,
        transcendentals=0,
        bytes_accessed=(Mp * Dp * 2) * (Cp // tn)      # x re-streamed per N block
        + (Dp * Cp * 2) * (Mp // tm)                   # W re-streamed per M block
        + Cp * 4 + Mp * Cp * 4)

    out_p = pl.pallas_call(
        _linear_kernel,
        out_shape=jax.ShapeDtypeStruct((Mp, Cp), jnp.float32),
        grid_spec=pltpu.PrefetchScalarGridSpec(
            num_scalar_prefetch=0,
            grid=grid,
            in_specs=[
                pl.BlockSpec((tm, tk), lambda i, j, k: (i, k)),   # x tile
                pl.BlockSpec((tk, tn), lambda i, j, k: (k, j)),   # W tile (D, C)
                pl.BlockSpec((1, tn), lambda i, j, k: (0, j)),    # bias tile
            ],
            out_specs=pl.BlockSpec((tm, tn), lambda i, j, k: (i, j)),
        ),
        compiler_params=pltpu.CompilerParams(
            dimension_semantics=("parallel", "parallel", "arbitrary"),
            vmem_limit_bytes=vmem_limit),
        cost_estimate=cost,
    )(x_p, w_p, b_p)

    return out_p[:B, :num_classes]


def mlp_classifier_forward(x, weight, bias):
    """Convenience one-shot wrapper (prefer caching prepare_linear_params)."""
    w_p, b_p = prepare_linear_params(weight, bias)
    return mlp_classifier_forward_prepared(x, w_p, b_p,
                                           num_classes=weight.shape[0])


def _reference(x, weight, bias):
    # Same bf16-in / f32-accumulate numerics as the kernel.
    xb = x.astype(jnp.bfloat16).astype(jnp.float32)
    wb = weight.astype(jnp.bfloat16).astype(jnp.float32)
    return xb @ wb.T + bias


if __name__ == "__main__":
    key = jax.random.PRNGKey(0)

    # --- Shape 1: the literal MLPClassifier-sized problem (GEMV regime) ------
    batch, input_dim, num_classes = 8, 32, 16
    kx, kw, kb, key = jax.random.split(key, 4)
    x = jax.random.normal(kx, (batch, input_dim), dtype=jnp.float32)
    bound = 1.0 / jnp.sqrt(jnp.float32(input_dim))
    weight = jax.random.uniform(kw, (num_classes, input_dim),
                                minval=-bound, maxval=bound, dtype=jnp.float32)
    bias = jax.random.uniform(kb, (num_classes,),
                              minval=-bound, maxval=bound, dtype=jnp.float32)

    out = mlp_classifier_forward(x, weight, bias)
    jax.block_until_ready(out)
    assert out.shape == (batch, num_classes)
    assert jnp.allclose(out, _reference(x, weight, bias), atol=1e-3, rtol=1e-3)

    # --- Shape 2: non-aligned, multi-block grid; cached-weight path ----------
    batch2, input_dim2, num_classes2 = 200, 640, 130
    kx, kw, kb, key = jax.random.split(key, 4)
    x2 = jax.random.normal(kx, (batch2, input_dim2), dtype=jnp.float32)
    bound2 = 1.0 / jnp.sqrt(jnp.float32(input_dim2))
    weight2 = jax.random.uniform(kw, (num_classes2, input_dim2),
                                 minval=-bound2, maxval=bound2, dtype=jnp.float32)
    bias2 = jax.random.uniform(kb, (num_classes2,),
                               minval=-bound2, maxval=bound2, dtype=jnp.float32)

    # Prepare once, reuse across calls (weights are static at inference time).
    w2_p, b2_p = prepare_linear_params(weight2, bias2)
    out2 = mlp_classifier_forward_prepared(x2, w2_p, b2_p,
                                           num_classes=num_classes2)
    out2b = mlp_classifier_forward_prepared(x2 * 0.5, w2_p, b2_p,
                                            num_classes=num_classes2)
    jax.block_until_ready((out2, out2b))
    assert out2.shape == (batch2, num_classes2)
    ref2 = _reference(x2, weight2, bias2)
    ref2b = _reference(x2 * 0.5, weight2, bias2)
    assert jnp.allclose(out2, ref2, atol=2e-3, rtol=2e-3)
    assert jnp.allclose(out2b, ref2b, atol=2e-3, rtol=2e-3)

    print("KERNEL_OK")
</pallas_src>

<mosaic_0001>
module attributes {stable_mosaic.version = 11 : i64} {
  func.func @_linear_kernel(%arg0: i32, %arg1: i32, %arg2: i32, %arg3: memref<16x128xbf16, #tpu.memory_space<vmem>>, %arg4: memref<128x128xbf16, #tpu.memory_space<vmem>>, %arg5: memref<1x128xf32, #tpu.memory_space<vmem>>, %arg6: memref<16x128xf32, #tpu.memory_space<vmem>>) attributes {dimension_semantics = [#tpu.dimension_semantics<parallel>, #tpu.dimension_semantics<parallel>, #tpu.dimension_semantics<arbitrary>], iteration_bounds = array<i64: 1, 1, 1>, scalar_prefetch = 0 : i64, scratch_operands = 0 : i64, tpu.core_type = #tpu.core_type<tc>, window_params = [{transform_indices = @transform_0, window_bounds = array<i64: 16, 128>}, {transform_indices = @transform_1, window_bounds = array<i64: 128, 128>}, {transform_indices = @transform_2, window_bounds = array<i64: 1, 128>}, {transform_indices = @transform_3, window_bounds = array<i64: 16, 128>}]} {
    %c0_i32 = arith.constant 0 : i32
    %0 = arith.cmpi eq, %arg2, %c0_i32 : i32
    %1 = arith.extui %0 : i1 to i32
    %c0_i32_0 = arith.constant 0 : i32
    %2 = arith.cmpi ne, %1, %c0_i32_0 : i32
    scf.if %2 {
      %c0_8 = arith.constant 0 : index
      %c0_9 = arith.constant 0 : index
      %9 = vector.load %arg5[%c0_8, %c0_9] : memref<1x128xf32, #tpu.memory_space<vmem>>, vector<1x128xf32>
      %10 = vector.shape_cast %9 : vector<1x128xf32> to vector<1x128xf32>
      %11 = vector.broadcast %10 : vector<1x128xf32> to vector<16x128xf32>
      %c0_10 = arith.constant 0 : index
      %c0_11 = arith.constant 0 : index
      %12 = vector.load %arg6[%c0_10, %c0_11] : memref<16x128xf32, #tpu.memory_space<vmem>>, vector<16x128xf32>
      tpu.vector_store %arg6[%c0_10, %c0_11], %11 {strides = array<i32>} : memref<16x128xf32, #tpu.memory_space<vmem>>, vector<16x128xf32>,
    } else {
    }
    %c0 = arith.constant 0 : index
    %c0_1 = arith.constant 0 : index
    %3 = vector.load %arg6[%c0, %c0_1] : memref<16x128xf32, #tpu.memory_space<vmem>>, vector<16x128xf32>
    %c0_2 = arith.constant 0 : index
    %c0_3 = arith.constant 0 : index
    %4 = vector.load %arg3[%c0_2, %c0_3] : memref<16x128xbf16, #tpu.memory_space<vmem>>, vector<16x128xbf16>
    %c0_4 = arith.constant 0 : index
    %c0_5 = arith.constant 0 : index
    %5 = vector.load %arg4[%c0_4, %c0_5] : memref<128x128xbf16, #tpu.memory_space<vmem>>, vector<128x128xbf16>
    %cst = arith.constant dense<0.000000e+00> : vector<16x128xf32>
    %6 = tpu.matmul %4, %5, %cst {dimension_numbers = #tpu.dot_dimension_numbers<[1], [0], [0], [1], [0, 0, 1, 1], [], []>} : vector<16x128xbf16>, vector<128x128xbf16>, vector<16x128xf32> -> vector<16x128xf32>
    %7 = arith.addf %3, %6 : vector<16x128xf32>
    %c0_6 = arith.constant 0 : index
    %c0_7 = arith.constant 0 : index
    %8 = vector.load %arg6[%c0_6, %c0_7] : memref<16x128xf32, #tpu.memory_space<vmem>>, vector<16x128xf32>
    tpu.vector_store %arg6[%c0_6, %c0_7], %7 {strides = array<i32>} : memref<16x128xf32, #tpu.memory_space<vmem>>, vector<16x128xf32>,
    return
  }
  func.func @transform_0(%arg0: i32, %arg1: i32, %arg2: i32) -> (i32, i32) {
    %c0_i32 = arith.constant 0 : i32
    return %arg0, %arg2 : i32, i32
  }
  func.func @transform_1(%arg0: i32, %arg1: i32, %arg2: i32) -> (i32, i32) {
    %c0_i32 = arith.constant 0 : i32
    return %arg2, %arg1 : i32, i32
  }
  func.func @transform_2(%arg0: i32, %arg1: i32, %arg2: i32) -> (i32, i32) {
    %c0_i32 = arith.constant 0 : i32
    %c0_i32_0 = arith.constant 0 : i32
    return %c0_i32, %arg1 : i32, i32
  }
  func.func @transform_3(%arg0: i32, %arg1: i32, %arg2: i32) -> (i32, i32) {
    %c0_i32 = arith.constant 0 : i32
    return %arg0, %arg1 : i32, i32
  }
}

</mosaic_0001>

<llo_original>
// kernel: mlp_classifier_forward_prepared.1
$region0: #{mlp_classifier_forward_prepared.1}
  #allocation0 [shape = 'u32[]', space=smem, size = 0x4, offset = 0x4, fixed_abs, tag = 'smem constant byte address 0x4 - core index']
  #allocation1 [shape = 'u32[144,128]{1,0:T(1,128)}', space=vmem, size = 0x12000, scoped, tag = 'internal scratch']
  %s0 = inlined_call_operand.vmem [shape: bf16[16,128], index: 0, kind: input, shape index: {}]
  %s1 = inlined_call_operand.hbm [shape: bf16[128,128], index: 1, kind: input, shape index: {}]
  %s2 = inlined_call_operand.vmem [shape: f32[1,128], index: 2, kind: input, shape index: {}]
  %s3 = inlined_call_operand.vmem [shape: f32[16,128], index: 3, kind: output, shape index: {}]
  %s4 = sld [smem:[#allocation0]]
  $region30: #{mlp_classifier_forward_prepared.1} parent=0
    _
  %s6 = ssub.s32 1, %s4
  %s7 = scalar_select 0, %s6, %s4
  $region1: #{mlp_classifier_forward_prepared.1} parent=0
    #allocation2 [shape = 'u8[32768]{0}', space=vmem, size = 0x8000, scoped, tag = 'input window, operand 1, single buffered']
    #allocation3 [shape = 's32[1]{0}', space=sflag, size = 0x4, scoped, tag = 'scoped memory for mlp_classifier_forward_prepared.1']
    %8 = vsyncpa [#allocation3], 0
    // Predicated region
    $region2: #{mlp_classifier_forward_prepared.1} parent=1 // pred_check
      _
    $region3: #{mlp_classifier_forward_prepared.1} parent=1 // pred_check_branch
      %10 = sbr.rel (0) target = $region5
    $region4: #{mlp_classifier_forward_prepared.1} parent=1 // pred_region
      _
    $region5: #{mlp_classifier_forward_prepared.1} parent=1 // pred_fallthru
      _
    // Predicated region
    $region6: #{mlp_classifier_forward_prepared.1} parent=1 // pred_check
      _
    $region7: #{mlp_classifier_forward_prepared.1} parent=1 // pred_check_branch
      %12 = sbr.rel (0) target = $region9
    $region8: #{mlp_classifier_forward_prepared.1} parent=1 // pred_region
      %s14 = ssub.s32 1024, 1024
      %15 = vsyncadd [#allocation3], %s14
      %s16 = sshll.u32 [#allocation2], 4
      %s17 = int_to_ptr.vmem [resolvable:$true] %s16
      %22 = dma.hbm_to_vmem [thread:$0]  %s1, 1024, %s17, [#allocation3], 64, 64, 4
    $region9: #{mlp_classifier_forward_prepared.1} parent=1 // pred_fallthru
      _
    // Predicated region
    $region10: #{mlp_classifier_forward_prepared.1} parent=1 // pred_check
      _
    $region11: #{mlp_classifier_forward_prepared.1} parent=1 // pred_check_branch
      %24 = sbr.rel (0) target = $region13
    $region12: #{mlp_classifier_forward_prepared.1} parent=1 // pred_region
      _
    $region13: #{mlp_classifier_forward_prepared.1} parent=1 // pred_fallthru
      _
    // Predicated region
    $region14: #{mlp_classifier_forward_prepared.1} parent=1 // pred_check
      _
    $region15: #{mlp_classifier_forward_prepared.1} parent=1 // pred_check_branch
      %26 = sbr.rel (0) target = $region17
    $region16: #{mlp_classifier_forward_prepared.1} parent=1 // pred_region
      %27 = dma.done [#allocation3], 1024
    $region17: #{mlp_classifier_forward_prepared.1} parent=1 // pred_fallthru
      _
    %p29 = scmp.eq.s32.totalorder 0, 0
    // Predicated region
    $region18: #{mlp_classifier_forward_prepared.1} parent=1 // pred_check
      %p30 = pneg %p29
    $region19: #{mlp_classifier_forward_prepared.1} parent=1 // pred_check_branch
      %32 = sbr.rel (%p30) target = $region21
    $region20: #{mlp_classifier_forward_prepared.1} parent=1 // pred_region
      %v33 = vld [vmem:[%s2] sm:$0x1]
      %v35 = vlaneseq
      %v36 = vshrl.u32 %v35, 7
      %v37 = vsub.s32 0, %v36
      %v38 = vrot.slane %v33, %v37
      %40 = vst [vmem:[%s3] sm:$0xff] %v38
      %41 = vst [vmem:[%s3 + $0x8] sm:$0xff] %v38
    $region21: #{mlp_classifier_forward_prepared.1} parent=1 // pred_fallthru
      _
    %v42 = vld [vmem:[%s3] sm:$0xff]
    %v43 = vld [vmem:[%s3 + $0x8] sm:$0xff]
    %v44 = vld [vmem:[%s0] sm:$0xf]
    %v45 = vld [vmem:[%s0 + $0x4] sm:$0xf]
    %v46 = vld [vmem:[#allocation2] sm:$0xf]
    %v47 = vld [vmem:[#allocation2 + $0x4] sm:$0xf]
    %v48 = vld [vmem:[#allocation2 + $0x8] sm:$0xf]
    %v49 = vld [vmem:[#allocation2 + $0xc] sm:$0xf]
    %v50 = vld [vmem:[#allocation2 + $0x10] sm:$0xf]
    %v51 = vld [vmem:[#allocation2 + $0x14] sm:$0xf]
    %v52 = vld [vmem:[#allocation2 + $0x18] sm:$0xf]
    %v53 = vld [vmem:[#allocation2 + $0x1c] sm:$0xf]
    %v54 = vld [vmem:[#allocation2 + $0x20] sm:$0xf]
    %v55 = vld [vmem:[#allocation2 + $0x24] sm:$0xf]
    %v56 = vld [vmem:[#allocation2 + $0x28] sm:$0xf]
    %v57 = vld [vmem:[#allocation2 + $0x2c] sm:$0xf]
    %v58 = vld [vmem:[#allocation2 + $0x30] sm:$0xf]
    %v59 = vld [vmem:[#allocation2 + $0x34] sm:$0xf]
    %v60 = vld [vmem:[#allocation2 + $0x38] sm:$0xf]
    %v61 = vld [vmem:[#allocation2 + $0x3c] sm:$0xf]
    %v64 = vunpack.c.l.b16 %v44
    %v65 = vunpack.c.l.b16 %v45
    %v66 = vpack.c.b16 %v65, %v64
    %v84 = vunpack.c.l.b16 %v46
    %v85 = vunpack.c.l.b16 %v47
    %v86 = vunpack.c.l.b16 %v48
    %v87 = vunpack.c.l.b16 %v49
    %v88 = vunpack.c.l.b16 %v50
    %v89 = vunpack.c.l.b16 %v51
    %v90 = vunpack.c.l.b16 %v52
    %v91 = vunpack.c.l.b16 %v53
    %v92 = vunpack.c.l.b16 %v54
    %v93 = vunpack.c.l.b16 %v55
    %v94 = vunpack.c.l.b16 %v56
    %v95 = vunpack.c.l.b16 %v57
    %v96 = vunpack.c.l.b16 %v58
    %v97 = vunpack.c.l.b16 %v59
    %v98 = vunpack.c.l.b16 %v60
    %v99 = vunpack.c.l.b16 %v61
    %v100 = vpack.c.b16 %v85, %v84
    %v101 = vpack.c.b16 %v87, %v86
    %v102 = vpack.c.b16 %v89, %v88
    %v103 = vpack.c.b16 %v91, %v90
    %v104 = vpack.c.b16 %v93, %v92
    %v105 = vpack.c.b16 %v95, %v94
    %v106 = vpack.c.b16 %v97, %v96
    %v107 = vpack.c.b16 %v99, %v98
    %116 = vmatprep.subr.bf16.mxu0 0
    %117 = vmatpush1.bf16.msra.mxu0 %v100
    %118 = vmatprep.subr.bf16.mxu0 0
    %119 = vmatpush1.bf16.msra.mxu0 %v101
    %120 = vmatprep.subr.bf16.mxu0 0
    %121 = vmatpush1.bf16.msra.mxu0 %v102
    %122 = vmatprep.subr.bf16.mxu0 0
    %123 = vmatpush1.bf16.msra.mxu0 %v103
    %124 = vmatprep.subr.bf16.mxu0 0
    %125 = vmatpush1.bf16.msra.mxu0 %v104
    %126 = vmatprep.subr.bf16.mxu0 0
    %127 = vmatpush1.bf16.msra.mxu0 %v105
    %128 = vmatprep.subr.bf16.mxu0 0
    %129 = vmatpush1.bf16.msra.mxu0 %v106
    %130 = vmatprep.subr.bf16.mxu0 0
    %131 = vmatpush1.bf16.msra.mxu0 %v107
    %132 = vmatprep.subr.bf16.mxu0 0
    %133 = vmatpush1.bf16.msra.mxu0 0
    %134 = vmatprep.subr.bf16.mxu0 0
    %135 = vmatpush1.bf16.msra.mxu0 0
    %136 = vmatprep.subr.bf16.mxu0 0
    %137 = vmatpush1.bf16.msra.mxu0 0
    %138 = vmatprep.subr.bf16.mxu0 0
    %139 = vmatpush1.bf16.msra.mxu0 0
    %140 = vmatprep.subr.bf16.mxu0 0
    %141 = vmatpush1.bf16.msra.mxu0 0
    %142 = vmatprep.subr.bf16.mxu0 0
    %143 = vmatpush1.bf16.msra.mxu0 0
    %144 = vmatprep.subr.bf16.mxu0 0
    %145 = vmatpush1.bf16.msra.mxu0 0
    %146 = vmatprep.subr.bf16.mxu0 0
    %147 = vmatpush1.bf16.msra.mxu0 0
    %148 = vmatprep.mubr.bf16.mxu0 0
    %149 = vmatmul.mubr.bf16.gmra.mrb[0].mxu0 %v66
    %v150 = vpop.f32.mrb[0].mxu0
    %v151 = vadd.f32 0.0, %v150
    %v152 = vpop.f32.mrb[0].mxu0
    %v153 = vpop.f32.mrb[0].mxu0
    %v154 = vadd.f32 0.0, %v153
    %v155 = vpop.f32.mrb[0].mxu0
    %156 = vdwg.mxu0
    %v157 = vadd.f32 %v42, %v151
    %v158 = vadd.f32 %v43, %v154
    %159 = vst [vmem:[%s3] sm:$0xff] %v157
    %160 = vst [vmem:[%s3 + $0x8] sm:$0xff] %v158
    // Predicated region
    $region22: #{mlp_classifier_forward_prepared.1} parent=1 // pred_check
      _
    $region23: #{mlp_classifier_forward_prepared.1} parent=1 // pred_check_branch
      %162 = sbr.rel (0) target = $region25
    $region24: #{mlp_classifier_forward_prepared.1} parent=1 // pred_region
      _
    $region25: #{mlp_classifier_forward_prepared.1} parent=1 // pred_fallthru
      _
    // Predicated region
    $region26: #{mlp_classifier_forward_prepared.1} parent=1 // pred_check
      _
    $region27: #{mlp_classifier_forward_prepared.1} parent=1 // pred_check_branch
      %164 = sbr.rel (0) target = $region29
    $region28: #{mlp_classifier_forward_prepared.1} parent=1 // pred_region
      _
    $region29: #{mlp_classifier_forward_prepared.1} parent=1 // pred_fallthru
      _
    %165 = vsyncpa [#allocation3], 1

</llo_original>
